<compile_context>
chip_gen: v7x
topology: tpu7x:2x2x1
jax: 0.10.0
libtpu: 0.0.40
codegen_flags: <defaults>
</compile_context>

<pallas_src>
import jax
import jax.numpy as jnp
from jax.experimental import pallas as pl
from jax.experimental.pallas import tpu as pltpu

K = 3          # conv kernel size (both convs)
EPS = 1e-5     # BatchNorm eps (PyTorch default)


def _fused_kernel(x1_ref, x2_ref, p_ref, y_ref):
    # x1_ref: (1, C1, H, W) f32 VMEM
    # x2_ref: (1, C2, H, W) f32 VMEM   (channel concat done by looping both refs)
    # p_ref : (C*K*K + K*K + 4,) f32 SMEM = [w1 flat, w2 flat, b1, b2, gamma, beta]
    # y_ref : (1, 1, H2, W2) f32 VMEM  (written directly; no wrapper post-op)
    _, C1, H, W = x1_ref.shape
    C2 = x2_ref.shape[1]
    C = C1 + C2
    H1, W1 = H - K + 1, W - K + 1
    H2, W2 = H1 - K + 1, W1 - K + 1

    off_w2 = C * K * K
    off_sc = off_w2 + K * K
    b1 = p_ref[off_sc + 0]
    b2 = p_ref[off_sc + 1]
    gamma = p_ref[off_sc + 2]
    beta = p_ref[off_sc + 3]

    # Channel planes: each (H, W) f32 = one padded vreg tile. Loaded once.
    chans = [x1_ref[0, c] for c in range(C1)] + [x2_ref[0, c] for c in range(C2)]

    # Logical shift by -1 along `axis`, expressed as a positive rotate.
    # Wraparound only contaminates rows/cols >= the valid output extent,
    # which are masked before any reduction and never stored.
    def shift_m1(v, axis, size):
        return pltpu.roll(v, shift=size - 1, axis=axis)

    def conv_combine(parts):
        # parts[ki][kj]: full-tile per-tap partial sums.  Horner-combine with
        # XLU rolls (no sub-tile slices): 2 lane rolls per ki + 2 sublane rolls.
        rows = []
        for ki in range(K):
            r = parts[ki][K - 1]
            for kj in range(K - 2, -1, -1):
                r = parts[ki][kj] + shift_m1(r, axis=1, size=W)
            rows.append(r)
        acc = rows[K - 1]
        for ki in range(K - 2, -1, -1):
            acc = rows[ki] + shift_m1(acc, axis=0, size=H)
        return acc

    # ---- conv1: (C -> 1), 3x3 valid.  Per-tap channel FMAs (no shifts), then
    #      roll-combine the 9 partials. ----
    parts1 = []
    for ki in range(K):
        row = []
        for kj in range(K):
            p = chans[0] * p_ref[0 * K * K + ki * K + kj]
            for c in range(1, C):
                p = p + chans[c] * p_ref[c * K * K + ki * K + kj]
            row.append(p)
        parts1.append(row)
    acc1 = conv_combine(parts1) + b1          # (H, W), valid in [0:H1, 0:W1]

    # ---- ReLU (full tile; invalid region stays finite garbage, never used) ----
    a1 = jnp.maximum(acc1, 0.0)

    # ---- conv2: (1 -> 1), 3x3 valid, same per-tap + roll-combine scheme ----
    parts2 = [[a1 * p_ref[off_w2 + ki * K + kj] for kj in range(K)]
              for ki in range(K)]
    acc2 = conv_combine(parts2) + b2          # (H, W), valid in [0:H2, 0:W2]

    # ---- BatchNorm (training-mode batch stats over the valid region) ----
    row_i = jax.lax.broadcasted_iota(jnp.int32, (H, W), 0)
    col_j = jax.lax.broadcasted_iota(jnp.int32, (H, W), 1)
    valid = (row_i < H2) & (col_j < W2)
    masked = jnp.where(valid, acc2, 0.0)      # mask ONCE, reuse for both stats
    n = float(H2 * W2)
    ssum = jnp.sum(masked)
    ssq = jnp.sum(masked * masked)
    mean = ssum / n
    # TODO(synk): single-pass E[x^2]-mean^2 can cancel for |mean| >> std; fine
    #             at these magnitudes and the 1e-4 tolerance.
    var = ssq / n - mean * mean
    scale = jax.lax.rsqrt(var + EPS) * gamma

    # ---- residual add y = x + bn(x); SINGLE store into the output ref ----
    y_full = acc2 + (acc2 - mean) * scale + beta
    y_ref[0, 0] = y_full[0:H2, 0:W2]


def pack_params(params):
    """One-time packing of all conv / BN parameters into a flat f32 SMEM table."""
    w1, b1, w2, b2, gamma, beta = params
    return jnp.concatenate([
        w1.reshape(-1), w2.reshape(-1),
        b1.reshape(-1), b2.reshape(-1),
        gamma.reshape(-1), beta.reshape(-1),
    ]).astype(jnp.float32)


@jax.jit
def model_forward(x1, x2, packed_params):
    """x1: (1, C1, H, W), x2: (1, C2, H, W) f32 (NCHW). Returns (1, 1, H-4, W-4)."""
    _, _, H, W = x1.shape
    H2, W2 = H - 2 * (K - 1), W - 2 * (K - 1)

    # Kernel writes the final (1,1,H2,W2) tensor directly -> no wrapper-side
    # slice/reshape op after the pallas_call.
    return pl.pallas_call(
        _fused_kernel,
        out_shape=jax.ShapeDtypeStruct((1, 1, H2, W2), jnp.float32),
        in_specs=[
            pl.BlockSpec(memory_space=pltpu.MemorySpace.VMEM),   # x1 (1,C1,H,W)
            pl.BlockSpec(memory_space=pltpu.MemorySpace.VMEM),   # x2 (1,C2,H,W)
            pl.BlockSpec(memory_space=pltpu.MemorySpace.SMEM),   # packed params
        ],
        out_specs=pl.BlockSpec(memory_space=pltpu.MemorySpace.VMEM),
    )(x1, x2, packed_params)


def ref_forward(x1, x2, params):
    """Pure-JAX reference (lax conv) for correctness checking."""
    w1, b1, w2, b2, gamma, beta = params
    dn = ("NCHW", "OIHW", "NCHW")
    x = jnp.concatenate([x1, x2], axis=1)
    y1 = jax.lax.conv_general_dilated(x, w1, (1, 1), "VALID",
                                      dimension_numbers=dn) + b1[None, :, None, None]
    y1 = jnp.maximum(y1, 0.0)
    y2 = jax.lax.conv_general_dilated(y1, w2, (1, 1), "VALID",
                                      dimension_numbers=dn) + b2[None, :, None, None]
    mean = jnp.mean(y2, axis=(0, 2, 3), keepdims=True)
    var = jnp.mean((y2 - mean) ** 2, axis=(0, 2, 3), keepdims=True)
    bn = (y2 - mean) * jax.lax.rsqrt(var + EPS)
    bn = bn * gamma[None, :, None, None] + beta[None, :, None, None]
    return y2 + bn


def init_params(key):
    """Deterministic PyTorch-style init (uniform +-1/sqrt(fan_in))."""
    c_cat = 3
    k1, k2, k3, k4 = jax.random.split(key, 4)
    fan1 = c_cat * K * K
    bnd1 = 1.0 / jnp.sqrt(float(fan1))
    w1 = jax.random.uniform(k1, (1, c_cat, K, K), jnp.float32, -bnd1, bnd1)
    b1 = jax.random.uniform(k2, (1,), jnp.float32, -bnd1, bnd1)
    fan2 = 1 * K * K
    bnd2 = 1.0 / jnp.sqrt(float(fan2))
    w2 = jax.random.uniform(k3, (1, 1, K, K), jnp.float32, -bnd2, bnd2)
    b2 = jax.random.uniform(k4, (1,), jnp.float32, -bnd2, bnd2)
    gamma = jnp.ones((1,), jnp.float32)   # BatchNorm affine defaults
    beta = jnp.zeros((1,), jnp.float32)
    return (w1, b1, w2, b2, gamma, beta)


if __name__ == "__main__":
    key = jax.random.PRNGKey(0)
    kx1, kx2, kp = jax.random.split(key, 3)

    H = W = 8
    x1 = jax.random.normal(kx1, (1, 2, H, W), jnp.float32)   # 2 channels
    x2 = jax.random.normal(kx2, (1, 1, H, W), jnp.float32)   # 1 channel -> cat = 3
    params = init_params(kp)

    # Pack parameters ONCE, outside the per-call path (single SMEM table).
    packed = jax.block_until_ready(pack_params(params))

    y = jax.block_until_ready(model_forward(x1, x2, packed))
    y_ref = jax.block_until_ready(ref_forward(x1, x2, params))

    assert y.shape == (1, 1, H - 4, W - 4)
    assert jnp.allclose(y, y_ref, atol=1e-4, rtol=1e-4), "mismatch vs JAX reference"

    print("KERNEL_OK")
</pallas_src>

<mosaic_0001>
module attributes {stable_mosaic.version = 11 : i64} {
  func.func @_fused_kernel(%arg0: memref<1x2x8x8xf32, #tpu.memory_space<vmem>>, %arg1: memref<1x1x8x8xf32, #tpu.memory_space<vmem>>, %arg2: memref<40xf32, #tpu.memory_space<smem>>, %arg3: memref<1x1x4x4xf32, #tpu.memory_space<vmem>>) attributes {dimension_semantics = [], scalar_prefetch = 0 : i64, scratch_operands = 0 : i64, tpu.core_type = #tpu.core_type<tc>} {
    %c36 = arith.constant 36 : index
    %0 = memref.load %arg2[%c36] : memref<40xf32, #tpu.memory_space<smem>>
    %c37 = arith.constant 37 : index
    %1 = memref.load %arg2[%c37] : memref<40xf32, #tpu.memory_space<smem>>
    %c38 = arith.constant 38 : index
    %2 = memref.load %arg2[%c38] : memref<40xf32, #tpu.memory_space<smem>>
    %c39 = arith.constant 39 : index
    %3 = memref.load %arg2[%c39] : memref<40xf32, #tpu.memory_space<smem>>
    %c0 = arith.constant 0 : index
    %c0_0 = arith.constant 0 : index
    %c0_1 = arith.constant 0 : index
    %c0_2 = arith.constant 0 : index
    %4 = vector.load %arg0[%c0, %c0_0, %c0_1, %c0_2] : memref<1x2x8x8xf32, #tpu.memory_space<vmem>>, vector<1x1x8x8xf32>
    %5 = vector.shape_cast %4 : vector<1x1x8x8xf32> to vector<8x8xf32>
    %c0_3 = arith.constant 0 : index
    %c1 = arith.constant 1 : index
    %c0_4 = arith.constant 0 : index
    %c0_5 = arith.constant 0 : index
    %6 = vector.load %arg0[%c0_3, %c1, %c0_4, %c0_5] : memref<1x2x8x8xf32, #tpu.memory_space<vmem>>, vector<1x1x8x8xf32>
    %7 = vector.shape_cast %6 : vector<1x1x8x8xf32> to vector<8x8xf32>
    %c0_6 = arith.constant 0 : index
    %c0_7 = arith.constant 0 : index
    %c0_8 = arith.constant 0 : index
    %c0_9 = arith.constant 0 : index
    %8 = vector.load %arg1[%c0_6, %c0_7, %c0_8, %c0_9] : memref<1x1x8x8xf32, #tpu.memory_space<vmem>>, vector<1x1x8x8xf32>
    %9 = vector.shape_cast %8 : vector<1x1x8x8xf32> to vector<8x8xf32>
    %c0_10 = arith.constant 0 : index
    %10 = memref.load %arg2[%c0_10] : memref<40xf32, #tpu.memory_space<smem>>
    %11 = vector.broadcast %10 : f32 to vector<8x8xf32>
    %12 = arith.mulf %5, %11 : vector<8x8xf32>
    %c9 = arith.constant 9 : index
    %13 = memref.load %arg2[%c9] : memref<40xf32, #tpu.memory_space<smem>>
    %14 = vector.broadcast %13 : f32 to vector<8x8xf32>
    %15 = arith.mulf %7, %14 : vector<8x8xf32>
    %16 = arith.addf %12, %15 : vector<8x8xf32>
    %c18 = arith.constant 18 : index
    %17 = memref.load %arg2[%c18] : memref<40xf32, #tpu.memory_space<smem>>
    %18 = vector.broadcast %17 : f32 to vector<8x8xf32>
    %19 = arith.mulf %9, %18 : vector<8x8xf32>
    %20 = arith.addf %16, %19 : vector<8x8xf32>
    %c1_11 = arith.constant 1 : index
    %21 = memref.load %arg2[%c1_11] : memref<40xf32, #tpu.memory_space<smem>>
    %22 = vector.broadcast %21 : f32 to vector<8x8xf32>
    %23 = arith.mulf %5, %22 : vector<8x8xf32>
    %c10 = arith.constant 10 : index
    %24 = memref.load %arg2[%c10] : memref<40xf32, #tpu.memory_space<smem>>
    %25 = vector.broadcast %24 : f32 to vector<8x8xf32>
    %26 = arith.mulf %7, %25 : vector<8x8xf32>
    %27 = arith.addf %23, %26 : vector<8x8xf32>
    %c19 = arith.constant 19 : index
    %28 = memref.load %arg2[%c19] : memref<40xf32, #tpu.memory_space<smem>>
    %29 = vector.broadcast %28 : f32 to vector<8x8xf32>
    %30 = arith.mulf %9, %29 : vector<8x8xf32>
    %31 = arith.addf %27, %30 : vector<8x8xf32>
    %c2 = arith.constant 2 : index
    %32 = memref.load %arg2[%c2] : memref<40xf32, #tpu.memory_space<smem>>
    %33 = vector.broadcast %32 : f32 to vector<8x8xf32>
    %34 = arith.mulf %5, %33 : vector<8x8xf32>
    %c11 = arith.constant 11 : index
    %35 = memref.load %arg2[%c11] : memref<40xf32, #tpu.memory_space<smem>>
    %36 = vector.broadcast %35 : f32 to vector<8x8xf32>
    %37 = arith.mulf %7, %36 : vector<8x8xf32>
    %38 = arith.addf %34, %37 : vector<8x8xf32>
    %c20 = arith.constant 20 : index
    %39 = memref.load %arg2[%c20] : memref<40xf32, #tpu.memory_space<smem>>
    %40 = vector.broadcast %39 : f32 to vector<8x8xf32>
    %41 = arith.mulf %9, %40 : vector<8x8xf32>
    %42 = arith.addf %38, %41 : vector<8x8xf32>
    %c3 = arith.constant 3 : index
    %43 = memref.load %arg2[%c3] : memref<40xf32, #tpu.memory_space<smem>>
    %44 = vector.broadcast %43 : f32 to vector<8x8xf32>
    %45 = arith.mulf %5, %44 : vector<8x8xf32>
    %c12 = arith.constant 12 : index
    %46 = memref.load %arg2[%c12] : memref<40xf32, #tpu.memory_space<smem>>
    %47 = vector.broadcast %46 : f32 to vector<8x8xf32>
    %48 = arith.mulf %7, %47 : vector<8x8xf32>
    %49 = arith.addf %45, %48 : vector<8x8xf32>
    %c21 = arith.constant 21 : index
    %50 = memref.load %arg2[%c21] : memref<40xf32, #tpu.memory_space<smem>>
    %51 = vector.broadcast %50 : f32 to vector<8x8xf32>
    %52 = arith.mulf %9, %51 : vector<8x8xf32>
    %53 = arith.addf %49, %52 : vector<8x8xf32>
    %c4 = arith.constant 4 : index
    %54 = memref.load %arg2[%c4] : memref<40xf32, #tpu.memory_space<smem>>
    %55 = vector.broadcast %54 : f32 to vector<8x8xf32>
    %56 = arith.mulf %5, %55 : vector<8x8xf32>
    %c13 = arith.constant 13 : index
    %57 = memref.load %arg2[%c13] : memref<40xf32, #tpu.memory_space<smem>>
    %58 = vector.broadcast %57 : f32 to vector<8x8xf32>
    %59 = arith.mulf %7, %58 : vector<8x8xf32>
    %60 = arith.addf %56, %59 : vector<8x8xf32>
    %c22 = arith.constant 22 : index
    %61 = memref.load %arg2[%c22] : memref<40xf32, #tpu.memory_space<smem>>
    %62 = vector.broadcast %61 : f32 to vector<8x8xf32>
    %63 = arith.mulf %9, %62 : vector<8x8xf32>
    %64 = arith.addf %60, %63 : vector<8x8xf32>
    %c5 = arith.constant 5 : index
    %65 = memref.load %arg2[%c5] : memref<40xf32, #tpu.memory_space<smem>>
    %66 = vector.broadcast %65 : f32 to vector<8x8xf32>
    %67 = arith.mulf %5, %66 : vector<8x8xf32>
    %c14 = arith.constant 14 : index
    %68 = memref.load %arg2[%c14] : memref<40xf32, #tpu.memory_space<smem>>
    %69 = vector.broadcast %68 : f32 to vector<8x8xf32>
    %70 = arith.mulf %7, %69 : vector<8x8xf32>
    %71 = arith.addf %67, %70 : vector<8x8xf32>
    %c23 = arith.constant 23 : index
    %72 = memref.load %arg2[%c23] : memref<40xf32, #tpu.memory_space<smem>>
    %73 = vector.broadcast %72 : f32 to vector<8x8xf32>
    %74 = arith.mulf %9, %73 : vector<8x8xf32>
    %75 = arith.addf %71, %74 : vector<8x8xf32>
    %c6 = arith.constant 6 : index
    %76 = memref.load %arg2[%c6] : memref<40xf32, #tpu.memory_space<smem>>
    %77 = vector.broadcast %76 : f32 to vector<8x8xf32>
    %78 = arith.mulf %5, %77 : vector<8x8xf32>
    %c15 = arith.constant 15 : index
    %79 = memref.load %arg2[%c15] : memref<40xf32, #tpu.memory_space<smem>>
    %80 = vector.broadcast %79 : f32 to vector<8x8xf32>
    %81 = arith.mulf %7, %80 : vector<8x8xf32>
    %82 = arith.addf %78, %81 : vector<8x8xf32>
    %c24 = arith.constant 24 : index
    %83 = memref.load %arg2[%c24] : memref<40xf32, #tpu.memory_space<smem>>
    %84 = vector.broadcast %83 : f32 to vector<8x8xf32>
    %85 = arith.mulf %9, %84 : vector<8x8xf32>
    %86 = arith.addf %82, %85 : vector<8x8xf32>
    %c7 = arith.constant 7 : index
    %87 = memref.load %arg2[%c7] : memref<40xf32, #tpu.memory_space<smem>>
    %88 = vector.broadcast %87 : f32 to vector<8x8xf32>
    %89 = arith.mulf %5, %88 : vector<8x8xf32>
    %c16 = arith.constant 16 : index
    %90 = memref.load %arg2[%c16] : memref<40xf32, #tpu.memory_space<smem>>
    %91 = vector.broadcast %90 : f32 to vector<8x8xf32>
    %92 = arith.mulf %7, %91 : vector<8x8xf32>
    %93 = arith.addf %89, %92 : vector<8x8xf32>
    %c25 = arith.constant 25 : index
    %94 = memref.load %arg2[%c25] : memref<40xf32, #tpu.memory_space<smem>>
    %95 = vector.broadcast %94 : f32 to vector<8x8xf32>
    %96 = arith.mulf %9, %95 : vector<8x8xf32>
    %97 = arith.addf %93, %96 : vector<8x8xf32>
    %c8 = arith.constant 8 : index
    %98 = memref.load %arg2[%c8] : memref<40xf32, #tpu.memory_space<smem>>
    %99 = vector.broadcast %98 : f32 to vector<8x8xf32>
    %100 = arith.mulf %5, %99 : vector<8x8xf32>
    %c17 = arith.constant 17 : index
    %101 = memref.load %arg2[%c17] : memref<40xf32, #tpu.memory_space<smem>>
    %102 = vector.broadcast %101 : f32 to vector<8x8xf32>
    %103 = arith.mulf %7, %102 : vector<8x8xf32>
    %104 = arith.addf %100, %103 : vector<8x8xf32>
    %c26 = arith.constant 26 : index
    %105 = memref.load %arg2[%c26] : memref<40xf32, #tpu.memory_space<smem>>
    %106 = vector.broadcast %105 : f32 to vector<8x8xf32>
    %107 = arith.mulf %9, %106 : vector<8x8xf32>
    %108 = arith.addf %104, %107 : vector<8x8xf32>
    %c7_i32 = arith.constant 7 : i32
    %109 = tpu.dynamic_rotate %42 by %c7_i32 dim 1 : vector<8x8xf32>, i32 -> vector<8x8xf32>
    %110 = arith.addf %31, %109 : vector<8x8xf32>
    %c7_i32_12 = arith.constant 7 : i32
    %111 = tpu.dynamic_rotate %110 by %c7_i32_12 dim 1 : vector<8x8xf32>, i32 -> vector<8x8xf32>
    %112 = arith.addf %20, %111 : vector<8x8xf32>
    %c7_i32_13 = arith.constant 7 : i32
    %113 = tpu.dynamic_rotate %75 by %c7_i32_13 dim 1 : vector<8x8xf32>, i32 -> vector<8x8xf32>
    %114 = arith.addf %64, %113 : vector<8x8xf32>
    %c7_i32_14 = arith.constant 7 : i32
    %115 = tpu.dynamic_rotate %114 by %c7_i32_14 dim 1 : vector<8x8xf32>, i32 -> vector<8x8xf32>
    %116 = arith.addf %53, %115 : vector<8x8xf32>
    %c7_i32_15 = arith.constant 7 : i32
    %117 = tpu.dynamic_rotate %108 by %c7_i32_15 dim 1 : vector<8x8xf32>, i32 -> vector<8x8xf32>
    %118 = arith.addf %97, %117 : vector<8x8xf32>
    %c7_i32_16 = arith.constant 7 : i32
    %119 = tpu.dynamic_rotate %118 by %c7_i32_16 dim 1 : vector<8x8xf32>, i32 -> vector<8x8xf32>
    %120 = arith.addf %86, %119 : vector<8x8xf32>
    %c7_i32_17 = arith.constant 7 : i32
    %121 = tpu.dynamic_rotate %120 by %c7_i32_17 dim 0 : vector<8x8xf32>, i32 -> vector<8x8xf32>
    %122 = arith.addf %116, %121 : vector<8x8xf32>
    %c7_i32_18 = arith.constant 7 : i32
    %123 = tpu.dynamic_rotate %122 by %c7_i32_18 dim 0 : vector<8x8xf32>, i32 -> vector<8x8xf32>
    %124 = arith.addf %112, %123 : vector<8x8xf32>
    %125 = vector.broadcast %0 : f32 to vector<8x8xf32>
    %126 = arith.addf %124, %125 : vector<8x8xf32>
    %cst = arith.constant 0.000000e+00 : f32
    %127 = vector.broadcast %cst : f32 to vector<8x8xf32>
    %128 = arith.maximumf %126, %127 : vector<8x8xf32>
    %c27 = arith.constant 27 : index
    %129 = memref.load %arg2[%c27] : memref<40xf32, #tpu.memory_space<smem>>
    %130 = vector.broadcast %129 : f32 to vector<8x8xf32>
    %131 = arith.mulf %128, %130 : vector<8x8xf32>
    %c28 = arith.constant 28 : index
    %132 = memref.load %arg2[%c28] : memref<40xf32, #tpu.memory_space<smem>>
    %133 = vector.broadcast %132 : f32 to vector<8x8xf32>
    %134 = arith.mulf %128, %133 : vector<8x8xf32>
    %c29 = arith.constant 29 : index
    %135 = memref.load %arg2[%c29] : memref<40xf32, #tpu.memory_space<smem>>
    %136 = vector.broadcast %135 : f32 to vector<8x8xf32>
    %137 = arith.mulf %128, %136 : vector<8x8xf32>
    %c30 = arith.constant 30 : index
    %138 = memref.load %arg2[%c30] : memref<40xf32, #tpu.memory_space<smem>>
    %139 = vector.broadcast %138 : f32 to vector<8x8xf32>
    %140 = arith.mulf %128, %139 : vector<8x8xf32>
    %c31 = arith.constant 31 : index
    %141 = memref.load %arg2[%c31] : memref<40xf32, #tpu.memory_space<smem>>
    %142 = vector.broadcast %141 : f32 to vector<8x8xf32>
    %143 = arith.mulf %128, %142 : vector<8x8xf32>
    %c32 = arith.constant 32 : index
    %144 = memref.load %arg2[%c32] : memref<40xf32, #tpu.memory_space<smem>>
    %145 = vector.broadcast %144 : f32 to vector<8x8xf32>
    %146 = arith.mulf %128, %145 : vector<8x8xf32>
    %c33 = arith.constant 33 : index
    %147 = memref.load %arg2[%c33] : memref<40xf32, #tpu.memory_space<smem>>
    %148 = vector.broadcast %147 : f32 to vector<8x8xf32>
    %149 = arith.mulf %128, %148 : vector<8x8xf32>
    %c34 = arith.constant 34 : index
    %150 = memref.load %arg2[%c34] : memref<40xf32, #tpu.memory_space<smem>>
    %151 = vector.broadcast %150 : f32 to vector<8x8xf32>
    %152 = arith.mulf %128, %151 : vector<8x8xf32>
    %c35 = arith.constant 35 : index
    %153 = memref.load %arg2[%c35] : memref<40xf32, #tpu.memory_space<smem>>
    %154 = vector.broadcast %153 : f32 to vector<8x8xf32>
    %155 = arith.mulf %128, %154 : vector<8x8xf32>
    %c7_i32_19 = arith.constant 7 : i32
    %156 = tpu.dynamic_rotate %137 by %c7_i32_19 dim 1 : vector<8x8xf32>, i32 -> vector<8x8xf32>
    %157 = arith.addf %134, %156 : vector<8x8xf32>
    %c7_i32_20 = arith.constant 7 : i32
    %158 = tpu.dynamic_rotate %157 by %c7_i32_20 dim 1 : vector<8x8xf32>, i32 -> vector<8x8xf32>
    %159 = arith.addf %131, %158 : vector<8x8xf32>
    %c7_i32_21 = arith.constant 7 : i32
    %160 = tpu.dynamic_rotate %146 by %c7_i32_21 dim 1 : vector<8x8xf32>, i32 -> vector<8x8xf32>
    %161 = arith.addf %143, %160 : vector<8x8xf32>
    %c7_i32_22 = arith.constant 7 : i32
    %162 = tpu.dynamic_rotate %161 by %c7_i32_22 dim 1 : vector<8x8xf32>, i32 -> vector<8x8xf32>
    %163 = arith.addf %140, %162 : vector<8x8xf32>
    %c7_i32_23 = arith.constant 7 : i32
    %164 = tpu.dynamic_rotate %155 by %c7_i32_23 dim 1 : vector<8x8xf32>, i32 -> vector<8x8xf32>
    %165 = arith.addf %152, %164 : vector<8x8xf32>
    %c7_i32_24 = arith.constant 7 : i32
    %166 = tpu.dynamic_rotate %165 by %c7_i32_24 dim 1 : vector<8x8xf32>, i32 -> vector<8x8xf32>
    %167 = arith.addf %149, %166 : vector<8x8xf32>
    %c7_i32_25 = arith.constant 7 : i32
    %168 = tpu.dynamic_rotate %167 by %c7_i32_25 dim 0 : vector<8x8xf32>, i32 -> vector<8x8xf32>
    %169 = arith.addf %163, %168 : vector<8x8xf32>
    %c7_i32_26 = arith.constant 7 : i32
    %170 = tpu.dynamic_rotate %169 by %c7_i32_26 dim 0 : vector<8x8xf32>, i32 -> vector<8x8xf32>
    %171 = arith.addf %159, %170 : vector<8x8xf32>
    %172 = vector.broadcast %1 : f32 to vector<8x8xf32>
    %173 = arith.addf %171, %172 : vector<8x8xf32>
    %174 = tpu.iota {dimensions = array<i32: 0>} : vector<8x8xi32>
    %175 = tpu.iota {dimensions = array<i32: 1>} : vector<8x8xi32>
    %c4_i32 = arith.constant 4 : i32
    %176 = vector.broadcast %c4_i32 : i32 to vector<8x8xi32>
    %177 = arith.cmpi slt, %174, %176 : vector<8x8xi32>
    %c4_i32_27 = arith.constant 4 : i32
    %178 = vector.broadcast %c4_i32_27 : i32 to vector<8x8xi32>
    %179 = arith.cmpi slt, %175, %178 : vector<8x8xi32>
    %180 = arith.andi %177, %179 : vector<8x8xi1>
    %cst_28 = arith.constant 0.000000e+00 : f32
    %181 = vector.broadcast %cst_28 : f32 to vector<8x8xf32>
    %182 = arith.select %180, %173, %181 : vector<8x8xi1>, vector<8x8xf32>
    %183 = vector.shape_cast %182 : vector<8x8xf32> to vector<1x8x8xf32>
    %cst_29 = arith.constant dense<0.000000e+00> : vector<1xf32>
    %184 = vector.multi_reduction <add>, %183, %cst_29 [1, 2] : vector<1x8x8xf32> to vector<1xf32>
    %185 = vector.shape_cast %184 : vector<1xf32> to vector<1x1x1xf32>
    %186 = vector.extract %185[0, 0, 0] : f32 from vector<1x1x1xf32>
    %187 = arith.mulf %182, %182 : vector<8x8xf32>
    %188 = vector.shape_cast %187 : vector<8x8xf32> to vector<1x8x8xf32>
    %cst_30 = arith.constant dense<0.000000e+00> : vector<1xf32>
    %189 = vector.multi_reduction <add>, %188, %cst_30 [1, 2] : vector<1x8x8xf32> to vector<1xf32>
    %190 = vector.shape_cast %189 : vector<1xf32> to vector<1x1x1xf32>
    %191 = vector.extract %190[0, 0, 0] : f32 from vector<1x1x1xf32>
    %cst_31 = arith.constant 1.600000e+01 : f32
    %192 = arith.divf %186, %cst_31 : f32
    %cst_32 = arith.constant 1.600000e+01 : f32
    %193 = arith.divf %191, %cst_32 : f32
    %194 = arith.mulf %192, %192 : f32
    %195 = arith.subf %193, %194 : f32
    %cst_33 = arith.constant 9.99999974E-6 : f32
    %196 = arith.addf %195, %cst_33 : f32
    %197 = math.rsqrt %196 : f32
    %198 = arith.mulf %197, %2 : f32
    %199 = vector.broadcast %192 : f32 to vector<8x8xf32>
    %200 = arith.subf %173, %199 : vector<8x8xf32>
    %201 = vector.broadcast %198 : f32 to vector<8x8xf32>
    %202 = arith.mulf %200, %201 : vector<8x8xf32>
    %203 = arith.addf %173, %202 : vector<8x8xf32>
    %204 = vector.broadcast %3 : f32 to vector<8x8xf32>
    %205 = arith.addf %203, %204 : vector<8x8xf32>
    %206 = vector.extract_strided_slice %205 {offsets = [0, 0], sizes = [4, 4], strides = [1, 1]} : vector<8x8xf32> to vector<4x4xf32>
    %c0_34 = arith.constant 0 : index
    %c0_35 = arith.constant 0 : index
    %c0_36 = arith.constant 0 : index
    %c0_37 = arith.constant 0 : index
    %207 = vector.load %arg3[%c0_34, %c0_35, %c0_36, %c0_37] : memref<1x1x4x4xf32, #tpu.memory_space<vmem>>, vector<1x1x4x4xf32>
    %208 = vector.shape_cast %207 : vector<1x1x4x4xf32> to vector<4x4xf32>
    %209 = vector.shape_cast %206 : vector<4x4xf32> to vector<1x1x4x4xf32>
    tpu.vector_store %arg3[%c0_34, %c0_35, %c0_36, %c0_37], %209 {strides = array<i32>} : memref<1x1x4x4xf32, #tpu.memory_space<vmem>>, vector<1x1x4x4xf32>,
    return
  }
}

</mosaic_0001>

<llo_original>
// kernel: model_forward.1
$region0: #{model_forward.1}
  #allocation0 [shape = 'u32[]', space=smem, size = 0x4, offset = 0x4, fixed_abs, tag = 'smem constant byte address 0x4 - core index']
  #allocation1 [shape = 'u32[144,128]{1,0:T(1,128)}', space=vmem, size = 0x12000, scoped, tag = 'internal scratch']
  %s0 = inlined_call_operand.hbm [shape: f32[1,2,8,8], index: 0, kind: input, shape index: {}]
  %s1 = inlined_call_operand.hbm [shape: f32[1,1,8,8], index: 1, kind: input, shape index: {}]
  %s2 = inlined_call_operand.vmem [shape: f32[40], index: 2, kind: input, shape index: {}]
  %s3 = inlined_call_operand.hbm [shape: f32[1,1,4,4], index: 3, kind: output, shape index: {}]
  %s4 = sld [smem:[#allocation0]]
  $region34: #{model_forward.1} parent=0
    _
  %s6 = ssub.s32 1, %s4
  %s7 = scalar_select 0, %s6, %s4
  $region1: #{model_forward.1} parent=0
    #allocation2 [shape = 'u8[8192]{0}', space=vmem, size = 0x2000, scoped, tag = 'input window, operand 0, single buffered']
    #allocation3 [shape = 's32[1]{0}', space=sflag, size = 0x4, scoped, tag = 'scoped memory for model_forward.1']
    #allocation4 [shape = 's32[1]{0}', space=sflag, size = 0x4, scoped, tag = 'scoped memory for model_forward.1']
    #allocation5 [shape = 's32[1]{0}', space=sflag, size = 0x4, scoped, tag = 'scoped memory for model_forward.1']
    #allocation6 [shape = 'u8[4096]{0}', space=vmem, size = 0x1000, scoped, tag = 'input window, operand 1, single buffered']
    #allocation7 [shape = 's32[1]{0}', space=sflag, size = 0x4, scoped, tag = 'scoped memory for model_forward.1']
    #allocation8 [shape = 'u8[512]{0}', space=smem, size = 0x200, scoped, tag = 'input window, operand 2, single buffered']
    #allocation9 [shape = 'u8[2048]{0}', space=vmem, size = 0x800, scoped, tag = 'output window, operand 0, single buffered']
    %8 = vsyncpa [#allocation3], 0
    %9 = vsyncpa [#allocation7], 0
    %10 = vsyncpa [#allocation5], 0
    %11 = vsyncpa [#allocation4], 0
    // Predicated region
    $region2: #{model_forward.1} parent=1 // pred_check
      _
    $region3: #{model_forward.1} parent=1 // pred_check_branch
      %13 = sbr.rel (0) target = $region5
    $region4: #{model_forward.1} parent=1 // pred_region
      %s15 = ssub.s32 256, 256
      %16 = vsyncadd [#allocation3], %s15
      %s17 = sshll.u32 [#allocation2], 4
      %s18 = int_to_ptr.vmem [resolvable:$true] %s17
      %23 = dma.hbm_to_vmem [thread:$0]  %s0, 256, %s18, [#allocation3], 128, 128, 8
    $region5: #{model_forward.1} parent=1 // pred_fallthru
      _
    // Predicated region
    $region6: #{model_forward.1} parent=1 // pred_check
      _
    $region7: #{model_forward.1} parent=1 // pred_check_branch
      %25 = sbr.rel (0) target = $region9
    $region8: #{model_forward.1} parent=1 // pred_region
      %s27 = ssub.s32 128, 128
      %28 = vsyncadd [#allocation7], %s27
      %s30 = sshll.u32 [#allocation6], 4
      %s31 = int_to_ptr.vmem [resolvable:$true] %s30
      %33 = dma.hbm_to_vmem [thread:$0]  %s1, 128, %s31, [#allocation7]
    $region9: #{model_forward.1} parent=1 // pred_fallthru
      _
    // Predicated region
    $region10: #{model_forward.1} parent=1 // pred_check
      _
    $region11: #{model_forward.1} parent=1 // pred_check_branch
      %35 = sbr.rel (0) target = $region13
    $region12: #{model_forward.1} parent=1 // pred_region
      %s37 = ssub.s32 16, 16
      %38 = vsyncadd [#allocation5], %s37
      %s40 = sshll.u32 %s2, 4
      %s41 = int_to_ptr.vmem [resolvable:$true] %s40
      %43 = dma.vmem_to_smem %s41, 16, [#allocation8], [#allocation5]
    $region13: #{model_forward.1} parent=1 // pred_fallthru
      _
    // Predicated region
    $region14: #{model_forward.1} parent=1 // pred_check
      _
    $region15: #{model_forward.1} parent=1 // pred_check_branch
      %45 = sbr.rel (0) target = $region17
    $region16: #{model_forward.1} parent=1 // pred_region
      %46 = dma.done [#allocation3], 256
    $region17: #{model_forward.1} parent=1 // pred_fallthru
      _
    // Predicated region
    $region18: #{model_forward.1} parent=1 // pred_check
      _
    $region19: #{model_forward.1} parent=1 // pred_check_branch
      %48 = sbr.rel (0) target = $region21
    $region20: #{model_forward.1} parent=1 // pred_region
      %49 = dma.done [#allocation7], 128
    $region21: #{model_forward.1} parent=1 // pred_fallthru
      _
    // Predicated region
    $region22: #{model_forward.1} parent=1 // pred_check
      _
    $region23: #{model_forward.1} parent=1 // pred_check_branch
      %51 = sbr.rel (0) target = $region25
    $region24: #{model_forward.1} parent=1 // pred_region
      %52 = dma.done [#allocation5], 16
    $region25: #{model_forward.1} parent=1 // pred_fallthru
      _
    %53 = sfence
    %s54 = sld [smem:[#allocation8 + $0x24]]
    %s55 = sld [smem:[#allocation8 + $0x25]]
    %s56 = sld [smem:[#allocation8 + $0x26]]
    %s57 = sld [smem:[#allocation8 + $0x27]]
    %v58 = vld [vmem:[#allocation2] sm:$0xff]
    %s59 = scalar_lea.vmem [#allocation2], 8
    %v60 = vld [vmem:[%s59] sm:$0xff]
    %v61 = vld [vmem:[#allocation6] sm:$0xff]
    %s62 = sld [smem:[#allocation8]]
    %v63 = vstv %s62
    %v64 = vmul.f32 %v58, %v63
    %s65 = sld [smem:[#allocation8 + $0x9]]
    %v66 = vstv %s65
    %v67 = vmul.f32 %v60, %v66
    %v68 = vadd.f32 %v64, %v67
    %s69 = sld [smem:[#allocation8 + $0x12]]
    %v70 = vstv %s69
    %v71 = vmul.f32 %v61, %v70
    %v72 = vadd.f32 %v68, %v71
    %s73 = sld [smem:[#allocation8 + $0x1]]
    %v74 = vstv %s73
    %v75 = vmul.f32 %v58, %v74
    %s76 = sld [smem:[#allocation8 + $0xa]]
    %v77 = vstv %s76
    %v78 = vmul.f32 %v60, %v77
    %v79 = vadd.f32 %v75, %v78
    %s80 = sld [smem:[#allocation8 + $0x13]]
    %v81 = vstv %s80
    %v82 = vmul.f32 %v61, %v81
    %v83 = vadd.f32 %v79, %v82
    %s84 = sld [smem:[#allocation8 + $0x2]]
    %v85 = vstv %s84
    %v86 = vmul.f32 %v58, %v85
    %s87 = sld [smem:[#allocation8 + $0xb]]
    %v88 = vstv %s87
    %v89 = vmul.f32 %v60, %v88
    %v90 = vadd.f32 %v86, %v89
    %s91 = sld [smem:[#allocation8 + $0x14]]
    %v92 = vstv %s91
    %v93 = vmul.f32 %v61, %v92
    %v94 = vadd.f32 %v90, %v93
    %s95 = sld [smem:[#allocation8 + $0x3]]
    %v96 = vstv %s95
    %v97 = vmul.f32 %v58, %v96
    %s98 = sld [smem:[#allocation8 + $0xc]]
    %v99 = vstv %s98
    %v100 = vmul.f32 %v60, %v99
    %v101 = vadd.f32 %v97, %v100
    %s102 = sld [smem:[#allocation8 + $0x15]]
    %v103 = vstv %s102
    %v104 = vmul.f32 %v61, %v103
    %v105 = vadd.f32 %v101, %v104
    %s106 = sld [smem:[#allocation8 + $0x4]]
    %v107 = vstv %s106
    %v108 = vmul.f32 %v58, %v107
    %s109 = sld [smem:[#allocation8 + $0xd]]
    %v110 = vstv %s109
    %v111 = vmul.f32 %v60, %v110
    %v112 = vadd.f32 %v108, %v111
    %s113 = sld [smem:[#allocation8 + $0x16]]
    %v114 = vstv %s113
    %v115 = vmul.f32 %v61, %v114
    %v116 = vadd.f32 %v112, %v115
    %s117 = sld [smem:[#allocation8 + $0x5]]
    %v118 = vstv %s117
    %v119 = vmul.f32 %v58, %v118
    %s120 = sld [smem:[#allocation8 + $0xe]]
    %v121 = vstv %s120
    %v122 = vmul.f32 %v60, %v121
    %v123 = vadd.f32 %v119, %v122
    %s124 = sld [smem:[#allocation8 + $0x17]]
    %v125 = vstv %s124
    %v126 = vmul.f32 %v61, %v125
    %v127 = vadd.f32 %v123, %v126
    %s128 = sld [smem:[#allocation8 + $0x6]]
    %v129 = vstv %s128
    %v130 = vmul.f32 %v58, %v129
    %s131 = sld [smem:[#allocation8 + $0xf]]
    %v132 = vstv %s131
    %v133 = vmul.f32 %v60, %v132
    %v134 = vadd.f32 %v130, %v133
    %s135 = sld [smem:[#allocation8 + $0x18]]
    %v136 = vstv %s135
    %v137 = vmul.f32 %v61, %v136
    %v138 = vadd.f32 %v134, %v137
    %s139 = sld [smem:[#allocation8 + $0x7]]
    %v140 = vstv %s139
    %v141 = vmul.f32 %v58, %v140
    %s142 = sld [smem:[#allocation8 + $0x10]]
    %v143 = vstv %s142
    %v144 = vmul.f32 %v60, %v143
    %v145 = vadd.f32 %v141, %v144
    %s146 = sld [smem:[#allocation8 + $0x19]]
    %v147 = vstv %s146
    %v148 = vmul.f32 %v61, %v147
    %v149 = vadd.f32 %v145, %v148
    %s150 = sld [smem:[#allocation8 + $0x8]]
    %v151 = vstv %s150
    %v152 = vmul.f32 %v58, %v151
    %s153 = sld [smem:[#allocation8 + $0x11]]
    %v154 = vstv %s153
    %v155 = vmul.f32 %v60, %v154
    %v156 = vadd.f32 %v152, %v155
    %s157 = sld [smem:[#allocation8 + $0x1a]]
    %v158 = vstv %s157
    %v159 = vmul.f32 %v61, %v158
    %v160 = vadd.f32 %v156, %v159
    %vm161 = vcmask 1047616
    %162 = vrot.lane.b32.xlu0 %v94, 8
    %v163 = vpop.permute.xlu0 %162
    %v164 = vsel %vm161, %v163, %v94
    %165 = vrot.lane.b32.xlu0 %v164, 8
    %v166 = vpop.permute.xlu0 %165
    %v167 = vsel %vm161, %v166, %v94
    %169 = vrot.lane.b32.xlu0 %v167, 127
    %v170 = vpop.permute.xlu0 %169
    %v172 = vadd.f32 %v83, %v170
    %173 = vrot.lane.b32.xlu0 %v172, 8
    %v174 = vpop.permute.xlu0 %173
    %v175 = vsel %vm161, %v174, %v172
    %176 = vrot.lane.b32.xlu0 %v175, 8
    %v177 = vpop.permute.xlu0 %176
    %v178 = vsel %vm161, %v177, %v172
    %180 = vrot.lane.b32.xlu0 %v178, 127
    %v181 = vpop.permute.xlu0 %180
    %v183 = vadd.f32 %v72, %v181
    %184 = vrot.lane.b32.xlu0 %v127, 8
    %v185 = vpop.permute.xlu0 %184
    %v186 = vsel %vm161, %v185, %v127
    %187 = vrot.lane.b32.xlu0 %v186, 8
    %v188 = vpop.permute.xlu0 %187
    %v189 = vsel %vm161, %v188, %v127
    %191 = vrot.lane.b32.xlu0 %v189, 127
    %v192 = vpop.permute.xlu0 %191
    %v194 = vadd.f32 %v116, %v192
    %195 = vrot.lane.b32.xlu0 %v194, 8
    %v196 = vpop.permute.xlu0 %195
    %v197 = vsel %vm161, %v196, %v194
    %198 = vrot.lane.b32.xlu0 %v197, 8
    %v199 = vpop.permute.xlu0 %198
    %v200 = vsel %vm161, %v199, %v194
    %202 = vrot.lane.b32.xlu0 %v200, 127
    %v203 = vpop.permute.xlu0 %202
    %v205 = vadd.f32 %v105, %v203
    %206 = vrot.lane.b32.xlu0 %v160, 8
    %v207 = vpop.permute.xlu0 %206
    %v208 = vsel %vm161, %v207, %v160
    %209 = vrot.lane.b32.xlu0 %v208, 8
    %v210 = vpop.permute.xlu0 %209
    %v211 = vsel %vm161, %v210, %v160
    %213 = vrot.lane.b32.xlu0 %v211, 127
    %v214 = vpop.permute.xlu0 %213
    %v216 = vadd.f32 %v149, %v214
    %217 = vrot.lane.b32.xlu0 %v216, 8
    %v218 = vpop.permute.xlu0 %217
    %v219 = vsel %vm161, %v218, %v216
    %220 = vrot.lane.b32.xlu0 %v219, 8
    %v221 = vpop.permute.xlu0 %220
    %v222 = vsel %vm161, %v221, %v216
    %224 = vrot.lane.b32.xlu0 %v222, 127
    %v225 = vpop.permute.xlu0 %224
    %v227 = vadd.f32 %v138, %v225
    %v228 = vrot.slane %v227, 1
    %v229 = vadd.f32 %v205, %v228
    %v230 = vrot.slane %v229, 1
    %v231 = vadd.f32 %v183, %v230
    %v232 = vstv %s54
    %v233 = vadd.f32 %v231, %v232
    %v234 = vmax.f32 %v233, 0.0
    %s235 = sld [smem:[#allocation8 + $0x1b]]
    %v236 = vstv %s235
    %v237 = vmul.f32 %v234, %v236
    %s238 = sld [smem:[#allocation8 + $0x1c]]
    %v239 = vstv %s238
    %v240 = vmul.f32 %v234, %v239
    %s241 = sld [smem:[#allocation8 + $0x1d]]
    %v242 = vstv %s241
    %v243 = vmul.f32 %v234, %v242
    %s244 = sld [smem:[#allocation8 + $0x1e]]
    %v245 = vstv %s244
    %v246 = vmul.f32 %v234, %v245
    %s247 = sld [smem:[#allocation8 + $0x1f]]
    %v248 = vstv %s247
    %v249 = vmul.f32 %v234, %v248
    %s250 = sld [smem:[#allocation8 + $0x20]]
    %v251 = vstv %s250
    %v252 = vmul.f32 %v234, %v251
    %s253 = sld [smem:[#allocation8 + $0x21]]
    %v254 = vstv %s253
    %v255 = vmul.f32 %v234, %v254
    %s256 = sld [smem:[#allocation8 + $0x22]]
    %v257 = vstv %s256
    %v258 = vmul.f32 %v234, %v257
    %s259 = sld [smem:[#allocation8 + $0x23]]
    %v260 = vstv %s259
    %v261 = vmul.f32 %v234, %v260
    %262 = vrot.lane.b32.xlu0 %v243, 8
    %v263 = vpop.permute.xlu0 %262
    %v264 = vsel %vm161, %v263, %v243
    %265 = vrot.lane.b32.xlu0 %v264, 8
    %v266 = vpop.permute.xlu0 %265
    %v267 = vsel %vm161, %v266, %v243
    %269 = vrot.lane.b32.xlu0 %v267, 127
    %v270 = vpop.permute.xlu0 %269
    %v272 = vadd.f32 %v240, %v270
    %273 = vrot.lane.b32.xlu0 %v272, 8
    %v274 = vpop.permute.xlu0 %273
    %v275 = vsel %vm161, %v274, %v272
    %276 = vrot.lane.b32.xlu0 %v275, 8
    %v277 = vpop.permute.xlu0 %276
    %v278 = vsel %vm161, %v277, %v272
    %280 = vrot.lane.b32.xlu0 %v278, 127
    %v281 = vpop.permute.xlu0 %280
    %v283 = vadd.f32 %v237, %v281
    %284 = vrot.lane.b32.xlu0 %v252, 8
    %v285 = vpop.permute.xlu0 %284
    %v286 = vsel %vm161, %v285, %v252
    %287 = vrot.lane.b32.xlu0 %v286, 8
    %v288 = vpop.permute.xlu0 %287
    %v289 = vsel %vm161, %v288, %v252
    %291 = vrot.lane.b32.xlu0 %v289, 127
    %v292 = vpop.permute.xlu0 %291
    %v294 = vadd.f32 %v249, %v292
    %295 = vrot.lane.b32.xlu0 %v294, 8
    %v296 = vpop.permute.xlu0 %295
    %v297 = vsel %vm161, %v296, %v294
    %298 = vrot.lane.b32.xlu0 %v297, 8
    %v299 = vpop.permute.xlu0 %298
    %v300 = vsel %vm161, %v299, %v294
    %302 = vrot.lane.b32.xlu0 %v300, 127
    %v303 = vpop.permute.xlu0 %302
    %v305 = vadd.f32 %v246, %v303
    %306 = vrot.lane.b32.xlu0 %v261, 8
    %v307 = vpop.permute.xlu0 %306
    %v308 = vsel %vm161, %v307, %v261
    %309 = vrot.lane.b32.xlu0 %v308, 8
    %v310 = vpop.permute.xlu0 %309
    %v311 = vsel %vm161, %v310, %v261
    %313 = vrot.lane.b32.xlu0 %v311, 127
    %v314 = vpop.permute.xlu0 %313
    %v316 = vadd.f32 %v258, %v314
    %317 = vrot.lane.b32.xlu0 %v316, 8
    %v318 = vpop.permute.xlu0 %317
    %v319 = vsel %vm161, %v318, %v316
    %320 = vrot.lane.b32.xlu0 %v319, 8
    %v321 = vpop.permute.xlu0 %320
    %v322 = vsel %vm161, %v321, %v316
    %324 = vrot.lane.b32.xlu0 %v322, 127
    %v325 = vpop.permute.xlu0 %324
    %v327 = vadd.f32 %v255, %v325
    %v328 = vrot.slane %v327, 1
    %v329 = vadd.f32 %v305, %v328
    %v330 = vrot.slane %v329, 1
    %v331 = vadd.f32 %v283, %v330
    %v332 = vstv %s55
    %v333 = vadd.f32 %v331, %v332
    %v334 = vlaneseq
    %v335 = vshrl.u32 %v334, 7
    %v336 = vlaneseq
    %v337 = vand.u32 %v336, 127
    %vm338 = vcmp.lt.s32.totalorder %v335, 4
    %vm339 = vcmp.lt.s32.totalorder %v337, 4
    %vm340 = vmand %vm338, %vm339
    %v341 = vsel %vm340, %v333, 0.0
    %vm342 = vcmask 64512
    %v343 = vsel %vm342, %v341, 0.0
    %344 = vadd.xlane.f32.xlu0 %v343
    %v345 = vpop.xlane.xlu0 %344
    %v346 = vrot.slane %v345, 4
    %v347 = vadd.f32 %v345, %v346
    %v348 = vrot.slane %v347, 2
    %v349 = vadd.f32 %v347, %v348
    %v350 = vrot.slane %v349, 1
    %v351 = vadd.f32 %v349, %v350
    %s352 = vtos %v351
    %v353 = vmul.f32 %v341, %v341
    %v354 = vsel %vm342, %v353, 0.0
    %355 = vadd.xlane.f32.xlu0 %v354
    %v356 = vpop.xlane.xlu0 %355
    %v357 = vrot.slane %v356, 4
    %v358 = vadd.f32 %v356, %v357
    %v359 = vrot.slane %v358, 2
    %v360 = vadd.f32 %v358, %v359
    %v361 = vrot.slane %v360, 1
    %v362 = vadd.f32 %v360, %v361
    %s363 = vtos %v362
    %v364 = vrcp.pop 16.0
    %s365 = vtos %v364
    %s366 = smul.f32 %s352, %s365
    %v367 = vrcp.pop 16.0
    %s368 = vtos %v367
    %s369 = smul.f32 %s363, %s368
    %s370 = smul.f32 %s366, %s366
    %s371 = ssub.f32 %s369, %s370
    %s372 = sadd.f32 %s371, 1e-05
    %v373 = vstv %s372
    %v374 = vrsqrt.pop %v373
    %s375 = vtos %v374
    %s376 = smul.f32 %s375, %s56
    %v377 = vstv %s366
    %v378 = vsub.f32 %v333, %v377
    %v379 = vstv %s376
    %v380 = vmul.f32 %v378, %v379
    %v381 = vadd.f32 %v333, %v380
    %v382 = vstv %s57
    %v383 = vadd.f32 %v381, %v382
    %vm384 = vcmask 27648
    %385 = vst.msk [vmem:[#allocation9] sm:$0xf] %vm384, %v383
    // Predicated region
    $region26: #{model_forward.1} parent=1 // pred_check
      _
    $region27: #{model_forward.1} parent=1 // pred_check_branch
      %387 = sbr.rel (0) target = $region29
    $region28: #{model_forward.1} parent=1 // pred_region
      %s389 = ssub.s32 64, 64
      %390 = vsyncadd [#allocation4], %s389
      %s392 = sshll.u32 [#allocation9], 4
      %s393 = int_to_ptr.vmem [resolvable:$true] %s392
      %395 = dma.vmem_to_hbm [thread:$0]  %s393, 64, %s3, [#allocation4]
    $region29: #{model_forward.1} parent=1 // pred_fallthru
      _
    // Predicated region
    $region30: #{model_forward.1} parent=1 // pred_check
      _
    $region31: #{model_forward.1} parent=1 // pred_check_branch
      %397 = sbr.rel (0) target = $region33
    $region32: #{model_forward.1} parent=1 // pred_region
      %398 = dma.done [#allocation4], 64
    $region33: #{model_forward.1} parent=1 // pred_fallthru
      _
    %399 = vsyncpa [#allocation3], 1
    %400 = vsyncpa [#allocation7], 1
    %401 = vsyncpa [#allocation4], 1
    %402 = vsyncpa [#allocation5], 1

</llo_original>
